<compile_context>
chip_gen: v6e
topology: v6e:2x2x1
jax: 0.10.0
libtpu: 0.0.40
codegen_flags: <defaults>
</compile_context>

<pallas_src>
import jax
import jax.numpy as jnp
from jax.experimental import pallas as pl
from jax.experimental.pallas import tpu as pltpu


def _round_up(x, m):
    return (x + m - 1) // m * m


def _cdiv(a, b):
    return -(-a // b)


def _vmem_capacity_bytes():
    """Physical VMEM per core (best effort; conservative fallback = 64 MiB)."""
    try:
        cap = getattr(pltpu.get_tpu_info(), "vmem_capacity_bytes", None)
        if cap:
            return int(cap)
    except Exception:
        pass
    return 64 << 20          # v7x-sized lower bound — safe on every generation


# --------------------------------------------------------------------------
# Kernels
# --------------------------------------------------------------------------
def ffn_kernel_resident(x_ref, w1_ref, b1_ref, w2_ref, b2_ref, o_ref):
    """Whole (padded) d_ff is VMEM-resident.  Grid = (M tiles,).
      x_ref:(tm,d_model)  w1_ref:(d_model,d_ff_p)  b1_ref:(1,d_ff_p)
      w2_ref:(d_ff_p,d_model)  b2_ref:(1,d_model)  o_ref:(tm,d_model)
    No accumulator scratch — output is written directly (nk == 1)."""
    h = jnp.dot(x_ref[...], w1_ref[...], preferred_element_type=jnp.float32)
    h = jnp.maximum(h + b1_ref[...], 0.0)
    # dropout (eval mode) == identity
    out = jnp.dot(h.astype(w2_ref.dtype), w2_ref[...],
                  preferred_element_type=jnp.float32)
    o_ref[...] = (out + b2_ref[...]).astype(o_ref.dtype)


def ffn_kernel_streamed(x_ref, w1_ref, b1_ref, w2_ref, b2_ref, o_ref, acc_ref):
    """d_ff streamed in tk-sized tiles.  Grid = (M tiles, d_ff tiles).
      x_ref:(tm,d_model)  w1_ref:(d_model,tk)  b1_ref:(1,tk)
      w2_ref:(tk,d_model) b2_ref:(1,d_model)   o_ref:(tm,d_model)
      acc_ref:(tm,d_model) f32 scratch."""
    k = pl.program_id(1)

    @pl.when(k == 0)
    def _init():
        acc_ref[...] = jnp.zeros_like(acc_ref)

    h = jnp.dot(x_ref[...], w1_ref[...], preferred_element_type=jnp.float32)
    h = jnp.maximum(h + b1_ref[...], 0.0)
    # dropout (eval mode) == identity
    acc_ref[...] += jnp.dot(h.astype(w2_ref.dtype), w2_ref[...],
                            preferred_element_type=jnp.float32)

    @pl.when(k == pl.num_programs(1) - 1)
    def _finish():
        o_ref[...] = (acc_ref[...] + b2_ref[...]).astype(o_ref.dtype)


# --------------------------------------------------------------------------
# One-time parameter prep (NOT in the per-call path)
# --------------------------------------------------------------------------
def prepare_ffn_params(w1, b1, w2, b2, *, compute_dtype=jnp.bfloat16,
                       k_tile=512, force_stream=False):
    """PyTorch nn.Linear convention in: w1 (d_ff, d_model), b1 (d_ff,),
    w2 (d_model, d_ff), b2 (d_model,).
    Transposes to MXU-friendly (K, N) layouts, casts weights to the compute
    dtype (bf16 default — MXU fast path), decides weight VMEM residency from
    the actual chip's VMEM size, and zero-pads d_ff accordingly."""
    d_ff, d_model = w1.shape
    wdt = jnp.dtype(compute_dtype)
    bpe_w = wdt.itemsize

    d_ff_128 = _round_up(d_ff, 128)
    vmem_cap = _vmem_capacity_bytes()

    # Resident iff both (padded) weight matrices fit even when counted as
    # double-buffered, leaving >half of VMEM for x/out tiles + headroom.
    resident_budget = int(vmem_cap * 0.45)
    resident = (not force_stream) and \
        (2 * 2 * d_model * d_ff_128 * bpe_w <= resident_budget)

    tk = d_ff_128 if resident else min(_round_up(k_tile, 128), d_ff_128)
    d_ff_p = _round_up(d_ff, tk)

    w1_t = w1.T.astype(wdt)                        # (d_model, d_ff)
    w2_t = w2.T.astype(wdt)                        # (d_ff, d_model)
    b1_2d = b1.reshape(1, d_ff).astype(jnp.float32)
    b2_2d = b2.reshape(1, d_model).astype(jnp.float32)
    if d_ff_p != d_ff:
        pad = d_ff_p - d_ff
        w1_t = jnp.pad(w1_t, ((0, 0), (0, pad)))
        w2_t = jnp.pad(w2_t, ((0, pad), (0, 0)))
        b1_2d = jnp.pad(b1_2d, ((0, 0), (0, pad)))

    return dict(w1=w1_t, b1=b1_2d, w2=w2_t, b2=b2_2d,
                tk=tk, resident=resident, vmem_cap=vmem_cap)


# --------------------------------------------------------------------------
# Forward wrapper
# --------------------------------------------------------------------------
def position_wise_feed_forward(x, params, *, m_tile=None):
    """x: (batch, seq, d_model); params from prepare_ffn_params."""
    batch, seq, d_model = x.shape
    w1, b1, w2, b2 = params["w1"], params["b1"], params["w2"], params["b2"]
    tk, resident = params["tk"], params["resident"]
    vmem_cap = params["vmem_cap"]
    compute_dtype = w1.dtype
    d_ff_p = w1.shape[1]

    bpe_w = jnp.dtype(compute_dtype).itemsize
    bpe_x = bpe_w                                  # x is pre-cast to compute dtype
    bpe_o = jnp.dtype(x.dtype).itemsize
    row_mult = 16 if bpe_x < 4 else 8              # sub-32-bit rows pack in pairs

    # Generation-aware VMEM ceiling: use most of a 128-MiB part (v5e/v6e),
    # stay well under v7x's 64 MiB per TensorCore.
    if vmem_cap >= (128 << 20):
        cap_hard = 100 << 20
    else:
        cap_hard = min(56 << 20, vmem_cap * 7 // 8)

    M = batch * seq
    if m_tile is None:
        # Bigger M tiles when weights are streamed (halves weight re-streaming
        # per doubling of tm); 256 is plenty when weights are VMEM-resident.
        m_tile = 256 if resident else 512

    # Balanced M tiling (minimizes padded rows); prefer >=2 tiles for large M
    # so the "parallel" axis can shard across v7x's two TensorCores.
    nt = _cdiv(M, m_tile)
    if nt == 1 and M >= 256:
        nt = 2
    tm = _round_up(_cdiv(M, nt), row_mult)

    def _vmem_est(tm_):
        return (2 * tm_ * d_model * bpe_x           # x tiles (double-buffered)
                + 2 * tm_ * d_model * bpe_o         # out tiles
                + 2 * d_model * tk * bpe_w          # w1 tiles
                + 2 * tk * d_model * bpe_w          # w2 tiles
                + 2 * tk * 4 + 2 * d_model * 4      # biases (f32)
                + (0 if resident else tm_ * d_model * 4))   # f32 acc scratch

    # Shrink tm if the double-buffered estimate would not fit (v7x fallback).
    while _vmem_est(tm) * 5 // 4 > cap_hard and tm > row_mult:
        tm = max(row_mult, _round_up(tm // 2, row_mult))

    M_p = _round_up(M, tm)
    nm = M_p // tm
    nk = d_ff_p // tk
    vmem_limit = int(min(max(_vmem_est(tm) * 5 // 4, 32 << 20), cap_hard))

    # Cast x once here (not per grid step in the kernel) and pad rows.
    x2d = x.reshape(M, d_model).astype(compute_dtype)
    if M_p != M:
        x2d = jnp.pad(x2d, ((0, M_p - M), (0, 0)))

    out_shape = jax.ShapeDtypeStruct((M_p, d_model), x.dtype)

    if resident:
        out2d = pl.pallas_call(
            ffn_kernel_resident,
            out_shape=out_shape,
            grid_spec=pltpu.PrefetchScalarGridSpec(
                num_scalar_prefetch=0,
                grid=(nm,),
                in_specs=[
                    pl.BlockSpec((tm, d_model), lambda i: (i, 0)),      # x
                    pl.BlockSpec((d_model, d_ff_p), lambda i: (0, 0)),  # w1^T (resident)
                    pl.BlockSpec((1, d_ff_p), lambda i: (0, 0)),        # b1
                    pl.BlockSpec((d_ff_p, d_model), lambda i: (0, 0)),  # w2^T (resident)
                    pl.BlockSpec((1, d_model), lambda i: (0, 0)),       # b2
                ],
                out_specs=pl.BlockSpec((tm, d_model), lambda i: (i, 0)),
            ),
            compiler_params=pltpu.CompilerParams(
                dimension_semantics=("parallel",),
                vmem_limit_bytes=vmem_limit),
        )(x2d, w1, b1, w2, b2)
    else:
        out2d = pl.pallas_call(
            ffn_kernel_streamed,
            out_shape=out_shape,
            grid_spec=pltpu.PrefetchScalarGridSpec(
                num_scalar_prefetch=0,
                grid=(nm, nk),                       # reduction (d_ff) axis last
                in_specs=[
                    pl.BlockSpec((tm, d_model), lambda i, k: (i, 0)),   # x
                    pl.BlockSpec((d_model, tk), lambda i, k: (0, k)),   # w1^T tile
                    pl.BlockSpec((1, tk), lambda i, k: (0, k)),         # b1 tile
                    pl.BlockSpec((tk, d_model), lambda i, k: (k, 0)),   # w2^T tile
                    pl.BlockSpec((1, d_model), lambda i, k: (0, 0)),    # b2
                ],
                out_specs=pl.BlockSpec((tm, d_model), lambda i, k: (i, 0)),
                scratch_shapes=[pltpu.VMEM((tm, d_model), jnp.float32)],
            ),
            compiler_params=pltpu.CompilerParams(
                dimension_semantics=("parallel", "arbitrary"),
                vmem_limit_bytes=vmem_limit),
        )(x2d, w1, b1, w2, b2)

    if M_p != M:
        out2d = out2d[:M]
    return out2d.reshape(batch, seq, d_model)


def _reference(x, w1, b1, w2, b2):
    h = jnp.maximum(x @ w1.T + b1, 0.0)
    return h @ w2.T + b2


if __name__ == "__main__":
    # Small shapes consistent with the module (lane-dense d_model).
    batch, seq, d_model, d_ff = 2, 8, 128, 256

    key = jax.random.PRNGKey(0)
    k_x, k_w1, k_b1, k_w2, k_b2, k_x2 = jax.random.split(key, 6)

    x = jax.random.normal(k_x, (batch, seq, d_model), dtype=jnp.float32)
    lim1 = 1.0 / d_model ** 0.5
    lim2 = 1.0 / d_ff ** 0.5
    # deterministic init mimicking nn.Linear's uniform(-1/sqrt(fan_in), ...)
    w1 = jax.random.uniform(k_w1, (d_ff, d_model), jnp.float32, -lim1, lim1)
    b1 = jax.random.uniform(k_b1, (d_ff,), jnp.float32, -lim1, lim1)
    w2 = jax.random.uniform(k_w2, (d_model, d_ff), jnp.float32, -lim2, lim2)
    b2 = jax.random.uniform(k_b2, (d_model,), jnp.float32, -lim2, lim2)

    ref = _reference(x, w1, b1, w2, b2)

    # 1) Default path: bf16 MXU compute, weights VMEM-resident (loose tol).
    params = prepare_ffn_params(w1, b1, w2, b2)
    out = jax.block_until_ready(position_wise_feed_forward(x, params))
    assert out.shape == (batch, seq, d_model)
    assert out.dtype == x.dtype
    assert jnp.allclose(out, ref, atol=1e-1, rtol=1e-1)

    # 2) f32 compute path, weights resident (tight check).
    params_f32 = prepare_ffn_params(w1, b1, w2, b2, compute_dtype=jnp.float32)
    out_f32 = jax.block_until_ready(position_wise_feed_forward(x, params_f32))
    assert jnp.allclose(out_f32, ref, atol=1e-4, rtol=1e-4)

    # 3) Streamed-d_ff fallback (forced), f32 for a tight accumulator check.
    params_st = prepare_ffn_params(w1, b1, w2, b2, compute_dtype=jnp.float32,
                                   k_tile=128, force_stream=True)
    out_st = jax.block_until_ready(position_wise_feed_forward(x, params_st))
    assert jnp.allclose(out_st, ref, atol=1e-4, rtol=1e-4)

    # 4) Ragged sizes: batch*seq not a tile multiple, d_ff not a 128 multiple.
    b3, s3, dff3 = 2, 9, 192
    x3 = jax.random.normal(k_x2, (b3, s3, d_model), dtype=jnp.float32)
    w1r, b1r, w2r = w1[:dff3], b1[:dff3], w2[:, :dff3]
    params3 = prepare_ffn_params(w1r, b1r, w2r, b2, compute_dtype=jnp.float32)
    out3 = jax.block_until_ready(position_wise_feed_forward(x3, params3))
    ref3 = _reference(x3, w1r, b1r, w2r, b2)
    assert out3.shape == (b3, s3, d_model)
    assert jnp.allclose(out3, ref3, atol=1e-4, rtol=1e-4)

    print("KERNEL_OK")
</pallas_src>

<mosaic_0001>
module attributes {stable_mosaic.version = 11 : i64} {
  func.func @ffn_kernel_resident(%arg0: i32, %arg1: memref<16x128xbf16, #tpu.memory_space<vmem>>, %arg2: memref<128x256xbf16, #tpu.memory_space<vmem>>, %arg3: memref<1x256xf32, #tpu.memory_space<vmem>>, %arg4: memref<256x128xbf16, #tpu.memory_space<vmem>>, %arg5: memref<1x128xf32, #tpu.memory_space<vmem>>, %arg6: memref<16x128xf32, #tpu.memory_space<vmem>>) attributes {dimension_semantics = [#tpu.dimension_semantics<parallel>], iteration_bounds = array<i64: 1>, scalar_prefetch = 0 : i64, scratch_operands = 0 : i64, tpu.core_type = #tpu.core_type<tc>, window_params = [{transform_indices = @transform_0, window_bounds = array<i64: 16, 128>}, {pipeline_mode = #tpu.pipeline_mode<synchronous>, transform_indices = @transform_1, window_bounds = array<i64: 128, 256>}, {pipeline_mode = #tpu.pipeline_mode<synchronous>, transform_indices = @transform_2, window_bounds = array<i64: 1, 256>}, {pipeline_mode = #tpu.pipeline_mode<synchronous>, transform_indices = @transform_3, window_bounds = array<i64: 256, 128>}, {pipeline_mode = #tpu.pipeline_mode<synchronous>, transform_indices = @transform_4, window_bounds = array<i64: 1, 128>}, {transform_indices = @transform_5, window_bounds = array<i64: 16, 128>}]} {
    %c0 = arith.constant 0 : index
    %c0_0 = arith.constant 0 : index
    %0 = vector.load %arg1[%c0, %c0_0] : memref<16x128xbf16, #tpu.memory_space<vmem>>, vector<16x128xbf16>
    %c0_1 = arith.constant 0 : index
    %c0_2 = arith.constant 0 : index
    %1 = vector.load %arg2[%c0_1, %c0_2] : memref<128x256xbf16, #tpu.memory_space<vmem>>, vector<128x256xbf16>
    %cst = arith.constant dense<0.000000e+00> : vector<16x256xf32>
    %2 = tpu.matmul %0, %1, %cst {dimension_numbers = #tpu.dot_dimension_numbers<[1], [0], [0], [1], [0, 0, 1, 1], [], []>} : vector<16x128xbf16>, vector<128x256xbf16>, vector<16x256xf32> -> vector<16x256xf32>
    %c0_3 = arith.constant 0 : index
    %c0_4 = arith.constant 0 : index
    %3 = vector.load %arg3[%c0_3, %c0_4] : memref<1x256xf32, #tpu.memory_space<vmem>>, vector<1x256xf32>
    %4 = vector.broadcast %3 : vector<1x256xf32> to vector<16x256xf32>
    %5 = arith.addf %2, %4 : vector<16x256xf32>
    %cst_5 = arith.constant 0.000000e+00 : f32
    %6 = vector.broadcast %cst_5 : f32 to vector<16x256xf32>
    %7 = arith.maximumf %5, %6 : vector<16x256xf32>
    %8 = arith.truncf %7 : vector<16x256xf32> to vector<16x256xbf16>
    %c0_6 = arith.constant 0 : index
    %c0_7 = arith.constant 0 : index
    %9 = vector.load %arg4[%c0_6, %c0_7] : memref<256x128xbf16, #tpu.memory_space<vmem>>, vector<256x128xbf16>
    %cst_8 = arith.constant dense<0.000000e+00> : vector<16x128xf32>
    %10 = tpu.matmul %8, %9, %cst_8 {dimension_numbers = #tpu.dot_dimension_numbers<[1], [0], [0], [1], [0, 0, 1, 1], [], []>} : vector<16x256xbf16>, vector<256x128xbf16>, vector<16x128xf32> -> vector<16x128xf32>
    %c0_9 = arith.constant 0 : index
    %c0_10 = arith.constant 0 : index
    %11 = vector.load %arg5[%c0_9, %c0_10] : memref<1x128xf32, #tpu.memory_space<vmem>>, vector<1x128xf32>
    %12 = vector.broadcast %11 : vector<1x128xf32> to vector<16x128xf32>
    %13 = arith.addf %10, %12 : vector<16x128xf32>
    %c0_11 = arith.constant 0 : index
    %c0_12 = arith.constant 0 : index
    %14 = vector.load %arg6[%c0_11, %c0_12] : memref<16x128xf32, #tpu.memory_space<vmem>>, vector<16x128xf32>
    tpu.vector_store %arg6[%c0_11, %c0_12], %13 {strides = array<i32>} : memref<16x128xf32, #tpu.memory_space<vmem>>, vector<16x128xf32>,
    return
  }
  func.func @transform_0(%arg0: i32) -> (i32, i32) {
    %c0_i32 = arith.constant 0 : i32
    %c0_i32_0 = arith.constant 0 : i32
    return %arg0, %c0_i32 : i32, i32
  }
  func.func @transform_1(%arg0: i32) -> (i32, i32) {
    %c0_i32 = arith.constant 0 : i32
    %c0_i32_0 = arith.constant 0 : i32
    %c0_i32_1 = arith.constant 0 : i32
    return %c0_i32, %c0_i32_0 : i32, i32
  }
  func.func @transform_2(%arg0: i32) -> (i32, i32) {
    %c0_i32 = arith.constant 0 : i32
    %c0_i32_0 = arith.constant 0 : i32
    %c0_i32_1 = arith.constant 0 : i32
    return %c0_i32, %c0_i32_0 : i32, i32
  }
  func.func @transform_3(%arg0: i32) -> (i32, i32) {
    %c0_i32 = arith.constant 0 : i32
    %c0_i32_0 = arith.constant 0 : i32
    %c0_i32_1 = arith.constant 0 : i32
    return %c0_i32, %c0_i32_0 : i32, i32
  }
  func.func @transform_4(%arg0: i32) -> (i32, i32) {
    %c0_i32 = arith.constant 0 : i32
    %c0_i32_0 = arith.constant 0 : i32
    %c0_i32_1 = arith.constant 0 : i32
    return %c0_i32, %c0_i32_0 : i32, i32
  }
  func.func @transform_5(%arg0: i32) -> (i32, i32) {
    %c0_i32 = arith.constant 0 : i32
    %c0_i32_0 = arith.constant 0 : i32
    return %arg0, %c0_i32 : i32, i32
  }
}

</mosaic_0001>

<llo_original>
// kernel: tpu_custom_call.1
$region0: #{tpu_custom_call.1}
  #allocation0 [shape = 'u32[]', space=smem, size = 0x4, offset = 0x4, fixed_abs, tag = 'smem constant byte address 0x4 - core index']
  #allocation1 [shape = 'u32[144,128]{1,0:T(1,128)}', space=vmem, size = 0x12000, scoped, tag = 'internal scratch']
  %s0 = inlined_call_operand.hbm [shape: bf16[16,128], index: 0, kind: input, shape index: {}]
  %s1 = inlined_call_operand.hbm [shape: bf16[128,256], index: 1, kind: input, shape index: {}]
  %s2 = inlined_call_operand.vmem [shape: f32[1,256], index: 2, kind: input, shape index: {}]
  %s3 = inlined_call_operand.hbm [shape: bf16[256,128], index: 3, kind: input, shape index: {}]
  %s4 = inlined_call_operand.vmem [shape: f32[1,128], index: 4, kind: input, shape index: {}]
  %s5 = inlined_call_operand.hbm [shape: f32[16,128], index: 5, kind: output, shape index: {}]
  %s6 = sld [smem:[#allocation0]]
  $region42: #{tpu_custom_call.1} parent=0
    _
  %s8 = ssub.s32 1, %s6
  %s9 = scalar_select 0, %s8, %s6
  $region1: #{tpu_custom_call.1} parent=0
    #allocation2 [shape = 'u8[4096]{0}', space=vmem, size = 0x1000, scoped, tag = 'input window, operand 0, single buffered']
    #allocation3 [shape = 's32[1]{0}', space=sflag, size = 0x4, scoped, tag = 'scoped memory for tpu_custom_call.1']
    #allocation4 [shape = 's32[1]{0}', space=sflag, size = 0x4, scoped, tag = 'scoped memory for tpu_custom_call.1']
    #allocation5 [shape = 'u8[65536]{0}', space=vmem, size = 0x10000, scoped, tag = 'input window, operand 1, single buffered']
    #allocation6 [shape = 's32[1]{0}', space=sflag, size = 0x4, scoped, tag = 'scoped memory for tpu_custom_call.1']
    #allocation7 [shape = 'u8[65536]{0}', space=vmem, size = 0x10000, scoped, tag = 'input window, operand 3, single buffered']
    #allocation8 [shape = 'u8[8192]{0}', space=vmem, size = 0x2000, scoped, tag = 'output window, operand 0, single buffered']
    %10 = vsyncpa [#allocation3], 0
    %11 = vsyncpa [#allocation6], 0
    %12 = vsyncpa [#allocation4], 0
    // Predicated region
    $region2: #{tpu_custom_call.1} parent=1 // pred_check
      _
    $region3: #{tpu_custom_call.1} parent=1 // pred_check_branch
      %14 = sbr.rel (0) target = $region5
    $region4: #{tpu_custom_call.1} parent=1 // pred_region
      %s16 = ssub.s32 128, 128
      %17 = vsyncadd [#allocation3], %s16
      %s18 = sshll.u32 [#allocation2], 4
      %s19 = int_to_ptr.vmem [resolvable:$true] %s18
      %24 = dma.hbm_to_vmem [thread:$0]  %s0, 128, %s19, [#allocation3], 64, 64, 4
    $region5: #{tpu_custom_call.1} parent=1 // pred_fallthru
      _
    // Predicated region
    $region6: #{tpu_custom_call.1} parent=1 // pred_check
      _
    $region7: #{tpu_custom_call.1} parent=1 // pred_check_branch
      %26 = sbr.rel (0) target = $region9
    $region8: #{tpu_custom_call.1} parent=1 // pred_region
      %s28 = ssub.s32 2048, 2048
      %29 = vsyncadd [#allocation6], %s28
      %s30 = sshll.u32 [#allocation5], 4
      %s31 = int_to_ptr.vmem [resolvable:$true] %s30
      %36 = dma.hbm_to_vmem [thread:$0]  %s1, 2048, %s31, [#allocation6], 128, 128, 8
    $region9: #{tpu_custom_call.1} parent=1 // pred_fallthru
      _
    // Predicated region
    $region10: #{tpu_custom_call.1} parent=1 // pred_check
      _
    $region11: #{tpu_custom_call.1} parent=1 // pred_check_branch
      %38 = sbr.rel (0) target = $region13
    $region12: #{tpu_custom_call.1} parent=1 // pred_region
      _
    $region13: #{tpu_custom_call.1} parent=1 // pred_fallthru
      _
    // Predicated region
    $region14: #{tpu_custom_call.1} parent=1 // pred_check
      _
    $region15: #{tpu_custom_call.1} parent=1 // pred_check_branch
      %40 = sbr.rel (0) target = $region17
    $region16: #{tpu_custom_call.1} parent=1 // pred_region
      %s42 = ssub.s32 2048, 2048
      %43 = vsyncadd [#allocation6], %s42
      %s44 = sshll.u32 [#allocation7], 4
      %s45 = int_to_ptr.vmem [resolvable:$true] %s44
      %50 = dma.hbm_to_vmem [thread:$0]  %s3, 2048, %s45, [#allocation6], 64, 64, 4
    $region17: #{tpu_custom_call.1} parent=1 // pred_fallthru
      _
    // Predicated region
    $region18: #{tpu_custom_call.1} parent=1 // pred_check
      _
    $region19: #{tpu_custom_call.1} parent=1 // pred_check_branch
      %52 = sbr.rel (0) target = $region21
    $region20: #{tpu_custom_call.1} parent=1 // pred_region
      _
    $region21: #{tpu_custom_call.1} parent=1 // pred_fallthru
      _
    // Predicated region
    $region22: #{tpu_custom_call.1} parent=1 // pred_check
      _
    $region23: #{tpu_custom_call.1} parent=1 // pred_check_branch
      %54 = sbr.rel (0) target = $region25
    $region24: #{tpu_custom_call.1} parent=1 // pred_region
      %55 = dma.done [#allocation3], 128
    $region25: #{tpu_custom_call.1} parent=1 // pred_fallthru
      _
    // Predicated region
    $region26: #{tpu_custom_call.1} parent=1 // pred_check
      _
    $region27: #{tpu_custom_call.1} parent=1 // pred_check_branch
      %57 = sbr.rel (0) target = $region29
    $region28: #{tpu_custom_call.1} parent=1 // pred_region
      %58 = dma.done [#allocation6], 2048
    $region29: #{tpu_custom_call.1} parent=1 // pred_fallthru
      _
    // Predicated region
    $region30: #{tpu_custom_call.1} parent=1 // pred_check
      _
    $region31: #{tpu_custom_call.1} parent=1 // pred_check_branch
      %60 = sbr.rel (0) target = $region33
    $region32: #{tpu_custom_call.1} parent=1 // pred_region
      %61 = dma.done [#allocation6], 2048
    $region33: #{tpu_custom_call.1} parent=1 // pred_fallthru
      _
    %v63 = vld [vmem:[#allocation2] sm:$0xf]
    %v64 = vld [vmem:[#allocation2 + $0x4] sm:$0xf]
    %v65 = vld [vmem:[#allocation5] sm:$0xff]
    %v66 = vld [vmem:[#allocation5 + $0x8] sm:$0xff]
    %v67 = vld [vmem:[#allocation5 + $0x10] sm:$0xff]
    %v68 = vld [vmem:[#allocation5 + $0x18] sm:$0xff]
    %v69 = vld [vmem:[#allocation5 + $0x20] sm:$0xff]
    %v70 = vld [vmem:[#allocation5 + $0x28] sm:$0xff]
    %v71 = vld [vmem:[#allocation5 + $0x30] sm:$0xff]
    %v72 = vld [vmem:[#allocation5 + $0x38] sm:$0xff]
    %v73 = vld [vmem:[#allocation5 + $0x40] sm:$0xff]
    %v74 = vld [vmem:[#allocation5 + $0x48] sm:$0xff]
    %v75 = vld [vmem:[#allocation5 + $0x50] sm:$0xff]
    %v76 = vld [vmem:[#allocation5 + $0x58] sm:$0xff]
    %v77 = vld [vmem:[#allocation5 + $0x60] sm:$0xff]
    %v78 = vld [vmem:[#allocation5 + $0x68] sm:$0xff]
    %v79 = vld [vmem:[#allocation5 + $0x70] sm:$0xff]
    %v80 = vld [vmem:[#allocation5 + $0x78] sm:$0xff]
    %v81 = vld [vmem:[%s2] sm:$0x3]
    %v83 = vlaneseq
    %v84 = vshrl.u32 %v83, 7
    %v85 = vsub.s32 0, %v84
    %v86 = vrot.slane %v81, %v85
    %v87 = vlaneseq
    %v88 = vshrl.u32 %v87, 7
    %v89 = vsub.s32 1, %v88
    %v90 = vrot.slane %v81, %v89
    %v95 = vunpack.c.l.b16 %v63
    %v96 = vunpack.c.l.b16 %v64
    %v97 = vpack.c.b16 %v96, %v95
    %v115 = vunpack.c.l.b16 %v65
    %v116 = vunpack.c.h.b16 %v65
    %v117 = vunpack.c.l.b16 %v66
    %v118 = vunpack.c.h.b16 %v66
    %v119 = vunpack.c.l.b16 %v67
    %v120 = vunpack.c.h.b16 %v67
    %v121 = vunpack.c.l.b16 %v68
    %v122 = vunpack.c.h.b16 %v68
    %v123 = vunpack.c.l.b16 %v69
    %v124 = vunpack.c.h.b16 %v69
    %v125 = vunpack.c.l.b16 %v70
    %v126 = vunpack.c.h.b16 %v70
    %v127 = vunpack.c.l.b16 %v71
    %v128 = vunpack.c.h.b16 %v71
    %v129 = vunpack.c.l.b16 %v72
    %v130 = vunpack.c.h.b16 %v72
    %v131 = vunpack.c.l.b16 %v73
    %v132 = vunpack.c.h.b16 %v73
    %v133 = vunpack.c.l.b16 %v74
    %v134 = vunpack.c.h.b16 %v74
    %v135 = vunpack.c.l.b16 %v75
    %v136 = vunpack.c.h.b16 %v75
    %v137 = vunpack.c.l.b16 %v76
    %v138 = vunpack.c.h.b16 %v76
    %v139 = vunpack.c.l.b16 %v77
    %v140 = vunpack.c.h.b16 %v77
    %v141 = vunpack.c.l.b16 %v78
    %v142 = vunpack.c.h.b16 %v78
    %v143 = vunpack.c.l.b16 %v79
    %v144 = vunpack.c.h.b16 %v79
    %v145 = vunpack.c.l.b16 %v80
    %v146 = vunpack.c.h.b16 %v80
    %v147 = vpack.c.b16 %v117, %v115
    %v148 = vpack.c.b16 %v118, %v116
    %v149 = vpack.c.b16 %v121, %v119
    %v150 = vpack.c.b16 %v122, %v120
    %v151 = vpack.c.b16 %v125, %v123
    %v152 = vpack.c.b16 %v126, %v124
    %v153 = vpack.c.b16 %v129, %v127
    %v154 = vpack.c.b16 %v130, %v128
    %v155 = vpack.c.b16 %v133, %v131
    %v156 = vpack.c.b16 %v134, %v132
    %v157 = vpack.c.b16 %v137, %v135
    %v158 = vpack.c.b16 %v138, %v136
    %v159 = vpack.c.b16 %v141, %v139
    %v160 = vpack.c.b16 %v142, %v140
    %v161 = vpack.c.b16 %v145, %v143
    %v162 = vpack.c.b16 %v146, %v144
    %179 = vmatprep.subr.bf16.mxu0 %v162
    %180 = vmatpush1.bf16.msra.mxu0 %v161
    %181 = vmatprep.subr.bf16.mxu0 %v160
    %182 = vmatpush1.bf16.msra.mxu0 %v159
    %183 = vmatprep.subr.bf16.mxu0 %v158
    %184 = vmatpush1.bf16.msra.mxu0 %v157
    %185 = vmatprep.subr.bf16.mxu0 %v156
    %186 = vmatpush1.bf16.msra.mxu0 %v155
    %187 = vmatprep.subr.bf16.mxu0 %v154
    %188 = vmatpush1.bf16.msra.mxu0 %v153
    %189 = vmatprep.subr.bf16.mxu0 %v152
    %190 = vmatpush1.bf16.msra.mxu0 %v151
    %191 = vmatprep.subr.bf16.mxu0 %v150
    %192 = vmatpush1.bf16.msra.mxu0 %v149
    %193 = vmatprep.subr.bf16.mxu0 %v148
    %194 = vmatpush1.bf16.msra.mxu0 %v147
    %195 = vmatprep.subr.bf16.mxu0 0
    %196 = vmatpush2.bf16.msra.mxu0 0
    %197 = vmatprep.subr.bf16.mxu0 0
    %198 = vmatpush2.bf16.msra.mxu0 0
    %199 = vmatprep.subr.bf16.mxu0 0
    %200 = vmatpush2.bf16.msra.mxu0 0
    %201 = vmatprep.subr.bf16.mxu0 0
    %202 = vmatpush2.bf16.msra.mxu0 0
    %203 = vmatprep.subr.bf16.mxu0 0
    %204 = vmatpush2.bf16.msra.mxu0 0
    %205 = vmatprep.subr.bf16.mxu0 0
    %206 = vmatpush2.bf16.msra.mxu0 0
    %207 = vmatprep.subr.bf16.mxu0 0
    %208 = vmatpush2.bf16.msra.mxu0 0
    %209 = vmatprep.subr.bf16.mxu0 0
    %210 = vmatpush2.bf16.msra.mxu0 0
    %211 = vmatprep.mubr.bf16.mxu0 0
    %212 = vmatmul.mubr.bf16.gmra.mxu0 %v97
    %v213 = vpop.f32.mrf.mxu0
    %v214 = vadd.f32 %v86, %v213
    %v215 = vpop.f32.mrf.mxu0
    %v216 = vadd.f32 %v90, %v215
    %v217 = vpop.f32.mrf.mxu0
    %v218 = vadd.f32 %v86, %v217
    %v219 = vpop.f32.mrf.mxu0
    %v220 = vadd.f32 %v90, %v219
    %221 = vdwg.mxu0
    %v222 = vmax.f32 %v214, 0.0
    %v223 = vmax.f32 %v216, 0.0
    %v224 = vmax.f32 %v218, 0.0
    %v225 = vmax.f32 %v220, 0.0
    %v226 = vpack.c.bf16 %v224, %v222
    %v227 = vpack.c.bf16 %v225, %v223
    %v228 = vld [vmem:[#allocation7] sm:$0xf]
    %v229 = vld [vmem:[#allocation7 + $0x4] sm:$0xf]
    %v230 = vld [vmem:[#allocation7 + $0x8] sm:$0xf]
    %v231 = vld [vmem:[#allocation7 + $0xc] sm:$0xf]
    %v232 = vld [vmem:[#allocation7 + $0x10] sm:$0xf]
    %v233 = vld [vmem:[#allocation7 + $0x14] sm:$0xf]
    %v234 = vld [vmem:[#allocation7 + $0x18] sm:$0xf]
    %v235 = vld [vmem:[#allocation7 + $0x1c] sm:$0xf]
    %v236 = vld [vmem:[#allocation7 + $0x20] sm:$0xf]
    %v237 = vld [vmem:[#allocation7 + $0x24] sm:$0xf]
    %v238 = vld [vmem:[#allocation7 + $0x28] sm:$0xf]
    %v239 = vld [vmem:[#allocation7 + $0x2c] sm:$0xf]
    %v240 = vld [vmem:[#allocation7 + $0x30] sm:$0xf]
    %v241 = vld [vmem:[#allocation7 + $0x34] sm:$0xf]
    %v242 = vld [vmem:[#allocation7 + $0x38] sm:$0xf]
    %v243 = vld [vmem:[#allocation7 + $0x3c] sm:$0xf]
    %v244 = vld [vmem:[#allocation7 + $0x40] sm:$0xf]
    %v245 = vld [vmem:[#allocation7 + $0x44] sm:$0xf]
    %v246 = vld [vmem:[#allocation7 + $0x48] sm:$0xf]
    %v247 = vld [vmem:[#allocation7 + $0x4c] sm:$0xf]
    %v248 = vld [vmem:[#allocation7 + $0x50] sm:$0xf]
    %v249 = vld [vmem:[#allocation7 + $0x54] sm:$0xf]
    %v250 = vld [vmem:[#allocation7 + $0x58] sm:$0xf]
    %v251 = vld [vmem:[#allocation7 + $0x5c] sm:$0xf]
    %v252 = vld [vmem:[#allocation7 + $0x60] sm:$0xf]
    %v253 = vld [vmem:[#allocation7 + $0x64] sm:$0xf]
    %v254 = vld [vmem:[#allocation7 + $0x68] sm:$0xf]
    %v255 = vld [vmem:[#allocation7 + $0x6c] sm:$0xf]
    %v256 = vld [vmem:[#allocation7 + $0x70] sm:$0xf]
    %v257 = vld [vmem:[#allocation7 + $0x74] sm:$0xf]
    %v258 = vld [vmem:[#allocation7 + $0x78] sm:$0xf]
    %v259 = vld [vmem:[#allocation7 + $0x7c] sm:$0xf]
    %v260 = vld [vmem:[%s4] sm:$0x1]
    %v262 = vlaneseq
    %v263 = vshrl.u32 %v262, 7
    %v264 = vsub.s32 0, %v263
    %v265 = vrot.slane %v260, %v264
    %v299 = vunpack.c.l.b16 %v228
    %v300 = vunpack.c.l.b16 %v229
    %v301 = vunpack.c.l.b16 %v230
    %v302 = vunpack.c.l.b16 %v231
    %v303 = vunpack.c.l.b16 %v232
    %v304 = vunpack.c.l.b16 %v233
    %v305 = vunpack.c.l.b16 %v234
    %v306 = vunpack.c.l.b16 %v235
    %v307 = vunpack.c.l.b16 %v236
    %v308 = vunpack.c.l.b16 %v237
    %v309 = vunpack.c.l.b16 %v238
    %v310 = vunpack.c.l.b16 %v239
    %v311 = vunpack.c.l.b16 %v240
    %v312 = vunpack.c.l.b16 %v241
    %v313 = vunpack.c.l.b16 %v242
    %v314 = vunpack.c.l.b16 %v243
    %v315 = vunpack.c.l.b16 %v244
    %v316 = vunpack.c.l.b16 %v245
    %v317 = vunpack.c.l.b16 %v246
    %v318 = vunpack.c.l.b16 %v247
    %v319 = vunpack.c.l.b16 %v248
    %v320 = vunpack.c.l.b16 %v249
    %v321 = vunpack.c.l.b16 %v250
    %v322 = vunpack.c.l.b16 %v251
    %v323 = vunpack.c.l.b16 %v252
    %v324 = vunpack.c.l.b16 %v253
    %v325 = vunpack.c.l.b16 %v254
    %v326 = vunpack.c.l.b16 %v255
    %v327 = vunpack.c.l.b16 %v256
    %v328 = vunpack.c.l.b16 %v257
    %v329 = vunpack.c.l.b16 %v258
    %v330 = vunpack.c.l.b16 %v259
    %v331 = vpack.c.b16 %v300, %v299
    %v332 = vpack.c.b16 %v302, %v301
    %v333 = vpack.c.b16 %v304, %v303
    %v334 = vpack.c.b16 %v306, %v305
    %v335 = vpack.c.b16 %v308, %v307
    %v336 = vpack.c.b16 %v310, %v309
    %v337 = vpack.c.b16 %v312, %v311
    %v338 = vpack.c.b16 %v314, %v313
    %v339 = vpack.c.b16 %v316, %v315
    %v340 = vpack.c.b16 %v318, %v317
    %v341 = vpack.c.b16 %v320, %v319
    %v342 = vpack.c.b16 %v322, %v321
    %v343 = vpack.c.b16 %v324, %v323
    %v344 = vpack.c.b16 %v326, %v325
    %v345 = vpack.c.b16 %v328, %v327
    %v346 = vpack.c.b16 %v330, %v329
    %363 = vmatprep.subr.bf16.mxu0 0
    %364 = vmatpush1.bf16.msra.mxu0 %v338
    %365 = vmatprep.subr.bf16.mxu0 0
    %366 = vmatpush1.bf16.msra.mxu0 %v337
    %367 = vmatprep.subr.bf16.mxu0 0
    %368 = vmatpush1.bf16.msra.mxu0 %v336
    %369 = vmatprep.subr.bf16.mxu0 0
    %370 = vmatpush1.bf16.msra.mxu0 %v335
    %371 = vmatprep.subr.bf16.mxu0 0
    %372 = vmatpush1.bf16.msra.mxu0 %v334
    %373 = vmatprep.subr.bf16.mxu0 0
    %374 = vmatpush1.bf16.msra.mxu0 %v333
    %375 = vmatprep.subr.bf16.mxu0 0
    %376 = vmatpush1.bf16.msra.mxu0 %v332
    %377 = vmatprep.subr.bf16.mxu0 0
    %378 = vmatpush1.bf16.msra.mxu0 %v331
    %379 = vmatprep.subr.bf16.mxu0 0
    %380 = vmatpush2.bf16.msra.mxu0 %v346
    %381 = vmatprep.subr.bf16.mxu0 0
    %382 = vmatpush2.bf16.msra.mxu0 %v345
    %383 = vmatprep.subr.bf16.mxu0 0
    %384 = vmatpush2.bf16.msra.mxu0 %v344
    %385 = vmatprep.subr.bf16.mxu0 0
    %386 = vmatpush2.bf16.msra.mxu0 %v343
    %387 = vmatprep.subr.bf16.mxu0 0
    %388 = vmatpush2.bf16.msra.mxu0 %v342
    %389 = vmatprep.subr.bf16.mxu0 0
    %390 = vmatpush2.bf16.msra.mxu0 %v341
    %391 = vmatprep.subr.bf16.mxu0 0
    %392 = vmatpush2.bf16.msra.mxu0 %v340
    %393 = vmatprep.subr.bf16.mxu0 0
    %394 = vmatpush2.bf16.msra.mxu0 %v339
    %395 = vmatprep.mubr.bf16.mxu0 %v227
    %396 = vmatmul.mubr.bf16.gmra.mxu0 %v226
    %v397 = vpop.f32.mrf.mxu0
    %v398 = vadd.f32 %v265, %v397
    %v399 = vpop.f32.mrf.mxu0
    %v400 = vpop.f32.mrf.mxu0
    %v401 = vadd.f32 %v265, %v400
    %v402 = vpop.f32.mrf.mxu0
    %403 = vdwg.mxu0
    %404 = vst [vmem:[#allocation8] sm:$0xff] %v398
    %405 = vst [vmem:[#allocation8 + $0x8] sm:$0xff] %v401
    // Predicated region
    $region34: #{tpu_custom_call.1} parent=1 // pred_check
      _
    $region35: #{tpu_custom_call.1} parent=1 // pred_check_branch
      %407 = sbr.rel (0) target = $region37
    $region36: #{tpu_custom_call.1} parent=1 // pred_region
      %s409 = ssub.s32 256, 256
      %410 = vsyncadd [#allocation4], %s409
      %s411 = sshll.u32 [#allocation8], 4
      %s412 = int_to_ptr.vmem [resolvable:$true] %s411
      %417 = dma.vmem_to_hbm [thread:$0]  %s412, 256, %s5, [#allocation4], 128, 128, 8
    $region37: #{tpu_custom_call.1} parent=1 // pred_fallthru
      _
    // Predicated region
    $region38: #{tpu_custom_call.1} parent=1 // pred_check
      _
    $region39: #{tpu_custom_call.1} parent=1 // pred_check_branch
      %419 = sbr.rel (0) target = $region41
    $region40: #{tpu_custom_call.1} parent=1 // pred_region
      %420 = dma.done [#allocation4], 256
    $region41: #{tpu_custom_call.1} parent=1 // pred_fallthru
      _
    %421 = vsyncpa [#allocation3], 1
    %422 = vsyncpa [#allocation6], 1
    %423 = vsyncpa [#allocation4], 1

</llo_original>
